<compile_context>
chip_gen: v6e
topology: v6e:2x2x1
jax: 0.10.0
libtpu: 0.0.40
codegen_flags: <defaults>
</compile_context>

<pallas_src>
import jax
import jax.numpy as jnp
from jax.experimental import pallas as pl
from jax.experimental.pallas import tpu as pltpu


# ----------------------------- kernels --------------------------------------


def _mse_rowsum_kernel(yp_ref, y_ref, o_ref):
    """Full-D path: (tile_m, D) blocks in, lane-dense (1, tile_m) block out."""
    diff = yp_ref[...].astype(jnp.float32) - y_ref[...].astype(jnp.float32)
    sq = diff * diff
    # Row reduction on the idle MXU (matvec with a ones vector); the XLU only
    # handles the small (tile_m, 1) -> (1, tile_m) relayout.
    ones = jnp.ones((sq.shape[-1], 1), dtype=jnp.float32)
    s = jnp.dot(sq, ones, preferred_element_type=jnp.float32)   # (tile_m, 1)
    o_ref[...] = s.T                                            # (1, tile_m)


def _make_dblock_kernel(d_total, tile_d):
    """D-blocked path for very large D: accumulate row sums across D tiles."""
    ragged_d = (d_total % tile_d) != 0

    def kernel(yp_ref, y_ref, o_ref, acc_ref):
        j = pl.program_id(1)

        @pl.when(j == 0)
        def _():
            acc_ref[...] = jnp.zeros_like(acc_ref)

        diff = yp_ref[...].astype(jnp.float32) - y_ref[...].astype(jnp.float32)
        sq = diff * diff
        if ragged_d:
            # Mask out-of-range D columns in the last block so padded garbage
            # never reaches the accumulator of valid rows.
            col = jax.lax.broadcasted_iota(jnp.int32, sq.shape, 1) + j * tile_d
            sq = jnp.where(col < d_total, sq, 0.0)
        ones = jnp.ones((sq.shape[-1], 1), dtype=jnp.float32)
        acc_ref[...] += jnp.dot(sq, ones, preferred_element_type=jnp.float32)

        @pl.when(j == pl.num_programs(1) - 1)
        def _():
            o_ref[...] = acc_ref[...].T

    return kernel


# --------------------------- tiling helpers ----------------------------------


def _round_up(x, m):
    return -(-x // m) * m


def _vmem_limit_bytes():
    """Generation-aware VMEM request (leave headroom below physical)."""
    cap = None
    try:
        info = pltpu.get_tpu_info()
        cap = getattr(info, "vmem_capacity_bytes", None)
    except Exception:
        cap = None
    if not cap:
        cap = 64 * 1024 * 1024            # conservative fallback (v7x-sized)
    if cap <= 64 * 1024 * 1024:
        return 48 * 1024 * 1024           # v7x: 64 MiB physical -> ask 48 MiB
    return 100 * 1024 * 1024              # v5e / v6e: 128 MiB physical


def _choose_tile_m(m, max_rows_from_budget):
    """Pick a 128-multiple row tile: as big as the budget allows, but keep
    enough grid steps for pipelining / megacore sharding."""
    m_units = -(-m // 128)                             # 128-row units over M
    t = min(32 * 1024, max_rows_from_budget)
    t = max(128, (t // 128) * 128)
    # Prefer >= 8 grid steps (>= 4 per TensorCore on v7x) when M supports it.
    if m_units >= 8:
        t = min(t, max(1, m_units // 8) * 128)
    return max(128, min(t, m_units * 128))


def _choose_d_tiles(d, itemsize, budget):
    """Tile sizes for the D-blocked path (very large D)."""
    tile_m = 256
    # 2 operands x 2 pipeline buffers + ~2 f32 temporaries, per element.
    per_elem = 2 * 2 * itemsize + 2 * 4
    tile_d = (budget // (tile_m * per_elem)) // 128 * 128
    tile_d = max(128, min(tile_d, _round_up(d, 128)))
    return tile_m, tile_d


# ----------------------------- entry point ------------------------------------


def my_mse_forward(y_pred, y):
    """Returns sum((y_pred - y)**2, axis=-1) (f32), matching MyMSE.forward."""
    assert y_pred.shape == y.shape
    lead_shape = y_pred.shape[:-1]
    D = y_pred.shape[-1]
    M = 1
    for s in lead_shape:
        M *= s

    itemsize = jnp.dtype(y_pred.dtype).itemsize
    vmem_limit = _vmem_limit_bytes()
    budget = int(vmem_limit * 0.55)        # double-buffered inputs + temps

    yp2 = y_pred.reshape(M, D)             # metadata-only reshape, no copy
    y2 = y.reshape(M, D)

    cost = pl.CostEstimate(
        flops=3 * M * D,
        transcendentals=0,
        bytes_accessed=2 * M * D * itemsize + 4 * M,
    )

    # VMEM accounting per row of one operand block (lane-padded to 128) plus
    # f32 temporaries the compiler may materialize.
    d_lanes = _round_up(D, 128)
    per_row_vmem = 2 * 2 * d_lanes * itemsize + 2 * d_lanes * 4
    full_d_rows = (budget // per_row_vmem) // 128 * 128

    if full_d_rows >= 128:
        # ---- main path: full D per block, rows tiled, ragged tail handled by
        # Pallas (no jnp.pad of the inputs) ----
        tile_m = _choose_tile_m(M, full_d_rows)
        grid = (pl.cdiv(M, tile_m),)
        out = pl.pallas_call(
            _mse_rowsum_kernel,
            out_shape=jax.ShapeDtypeStruct((1, M), jnp.float32),
            grid_spec=pltpu.PrefetchScalarGridSpec(
                num_scalar_prefetch=0,
                grid=grid,
                in_specs=[
                    pl.BlockSpec((tile_m, D), lambda i: (i, 0)),
                    pl.BlockSpec((tile_m, D), lambda i: (i, 0)),
                ],
                out_specs=pl.BlockSpec((1, tile_m), lambda i: (0, i)),
            ),
            compiler_params=pltpu.CompilerParams(
                dimension_semantics=("parallel",),
                vmem_limit_bytes=vmem_limit,
            ),
            cost_estimate=cost,
        )(yp2, y2)
    else:
        # ---- very large D: block the reduction axis, accumulate in VMEM ----
        tile_m, tile_d = _choose_d_tiles(D, itemsize, budget)
        grid = (pl.cdiv(M, tile_m), pl.cdiv(D, tile_d))
        out = pl.pallas_call(
            _make_dblock_kernel(D, tile_d),
            out_shape=jax.ShapeDtypeStruct((1, M), jnp.float32),
            grid_spec=pltpu.PrefetchScalarGridSpec(
                num_scalar_prefetch=0,
                grid=grid,
                in_specs=[
                    pl.BlockSpec((tile_m, tile_d), lambda i, j: (i, j)),
                    pl.BlockSpec((tile_m, tile_d), lambda i, j: (i, j)),
                ],
                out_specs=pl.BlockSpec((1, tile_m), lambda i, j: (0, i)),
                scratch_shapes=[pltpu.VMEM((tile_m, 1), jnp.float32)],
            ),
            compiler_params=pltpu.CompilerParams(
                dimension_semantics=("parallel", "arbitrary"),
                vmem_limit_bytes=vmem_limit,
            ),
            cost_estimate=cost,
        )(yp2, y2)

    # Keep f32 (matches the in-kernel f32 accumulation; no lossy downcast).
    return out.reshape(lead_shape)


if __name__ == "__main__":
    key = jax.random.PRNGKey(0)
    k1, k2 = jax.random.split(key)
    # small shapes implied by a generic (batch, seq, hidden) loss input
    y_pred = jax.random.normal(k1, (2, 8, 32), dtype=jnp.float32)
    y = jax.random.normal(k2, (2, 8, 32), dtype=jnp.float32)

    out = my_mse_forward(y_pred, y)
    jax.block_until_ready(out)

    # correctness check against plain JAX reference
    ref = jnp.sum((y_pred - y) ** 2, axis=-1)
    assert out.shape == ref.shape, (out.shape, ref.shape)
    assert jnp.allclose(out, ref, atol=1e-5, rtol=1e-5)

    print("KERNEL_OK")
</pallas_src>

<mosaic_0001>
module attributes {stable_mosaic.version = 11 : i64} {
  func.func @_mse_rowsum_kernel(%arg0: i32, %arg1: memref<128x32xf32, #tpu.memory_space<vmem>>, %arg2: memref<128x32xf32, #tpu.memory_space<vmem>>, %arg3: memref<1x128xf32, #tpu.memory_space<vmem>>) attributes {dimension_semantics = [#tpu.dimension_semantics<parallel>], iteration_bounds = array<i64: 1>, scalar_prefetch = 0 : i64, scratch_operands = 0 : i64, tpu.core_type = #tpu.core_type<tc>, window_params = [{transform_indices = @transform_0, window_bounds = array<i64: 128, 32>}, {transform_indices = @transform_1, window_bounds = array<i64: 128, 32>}, {transform_indices = @transform_2, window_bounds = array<i64: 1, 128>}]} {
    %c0 = arith.constant 0 : index
    %c0_0 = arith.constant 0 : index
    %0 = vector.load %arg1[%c0, %c0_0] : memref<128x32xf32, #tpu.memory_space<vmem>>, vector<128x32xf32>
    %c0_1 = arith.constant 0 : index
    %c0_2 = arith.constant 0 : index
    %1 = vector.load %arg2[%c0_1, %c0_2] : memref<128x32xf32, #tpu.memory_space<vmem>>, vector<128x32xf32>
    %2 = arith.subf %0, %1 : vector<128x32xf32>
    %3 = arith.mulf %2, %2 : vector<128x32xf32>
    %cst = arith.constant 1.000000e+00 : f32
    %4 = vector.broadcast %cst : f32 to vector<32x1xf32>
    %cst_3 = arith.constant dense<0.000000e+00> : vector<128x1xf32>
    %5 = tpu.matmul %3, %4, %cst_3 {dimension_numbers = #tpu.dot_dimension_numbers<[1], [0], [0], [1], [0, 0, 1, 1], [], []>} : vector<128x32xf32>, vector<32x1xf32>, vector<128x1xf32> -> vector<128x1xf32>
    %6 = tpu.transpose %5, [1, 0] : vector<128x1xf32> -> vector<1x128xf32>
    %c0_4 = arith.constant 0 : index
    %c0_5 = arith.constant 0 : index
    %7 = vector.load %arg3[%c0_4, %c0_5] : memref<1x128xf32, #tpu.memory_space<vmem>>, vector<1x128xf32>
    tpu.vector_store %arg3[%c0_4, %c0_5], %6 {strides = array<i32>} : memref<1x128xf32, #tpu.memory_space<vmem>>, vector<1x128xf32>,
    return
  }
  func.func @transform_0(%arg0: i32) -> (i32, i32) {
    %c0_i32 = arith.constant 0 : i32
    %c0_i32_0 = arith.constant 0 : i32
    return %arg0, %c0_i32 : i32, i32
  }
  func.func @transform_1(%arg0: i32) -> (i32, i32) {
    %c0_i32 = arith.constant 0 : i32
    %c0_i32_0 = arith.constant 0 : i32
    return %arg0, %c0_i32 : i32, i32
  }
  func.func @transform_2(%arg0: i32) -> (i32, i32) {
    %c0_i32 = arith.constant 0 : i32
    %c0_i32_0 = arith.constant 0 : i32
    return %c0_i32, %arg0 : i32, i32
  }
}

</mosaic_0001>

<llo_original>
// kernel: tpu_custom_call.1
$region0: #{tpu_custom_call.1}
  #allocation0 [shape = 'u32[]', space=smem, size = 0x4, offset = 0x4, fixed_abs, tag = 'smem constant byte address 0x4 - core index']
  #allocation1 [shape = 'u32[144,128]{1,0:T(1,128)}', space=vmem, size = 0x12000, scoped, tag = 'internal scratch']
  %s0 = inlined_call_operand.hbm [shape: f32[16,32], index: 0, kind: input, shape index: {}]
  %s1 = inlined_call_operand.hbm [shape: f32[16,32], index: 1, kind: input, shape index: {}]
  %s2 = inlined_call_operand.hbm [shape: f32[1,16], index: 2, kind: output, shape index: {}]
  %s3 = sld [smem:[#allocation0]]
  $region26: #{tpu_custom_call.1} parent=0
    _
  %s5 = ssub.s32 1, %s3
  %s6 = scalar_select 0, %s5, %s3
  $region1: #{tpu_custom_call.1} parent=0
    #allocation2 [shape = 'u8[65536]{0}', space=vmem, size = 0x10000, scoped, tag = 'input window, operand 0, single buffered']
    #allocation3 [shape = 's32[1]{0}', space=sflag, size = 0x4, scoped, tag = 'scoped memory for tpu_custom_call.1']
    #allocation4 [shape = 's32[1]{0}', space=sflag, size = 0x4, scoped, tag = 'scoped memory for tpu_custom_call.1']
    #allocation5 [shape = 'u8[65536]{0}', space=vmem, size = 0x10000, scoped, tag = 'input window, operand 1, single buffered']
    #allocation6 [shape = 's32[1]{0}', space=sflag, size = 0x4, scoped, tag = 'scoped memory for tpu_custom_call.1']
    #allocation7 [shape = 'u8[512]{0}', space=vmem, size = 0x400, scoped, tag = 'output window, operand 0, single buffered']
    %7 = vsyncpa [#allocation3], 0
    %8 = vsyncpa [#allocation6], 0
    %9 = vsyncpa [#allocation4], 0
    // Predicated region
    $region2: #{tpu_custom_call.1} parent=1 // pred_check
      _
    $region3: #{tpu_custom_call.1} parent=1 // pred_check_branch
      %11 = sbr.rel (0) target = $region5
    $region4: #{tpu_custom_call.1} parent=1 // pred_region
      %s13 = ssub.s32 2048, 256
      %14 = vsyncadd [#allocation3], %s13
      %s15 = sshll.u32 [#allocation2], 4
      %s16 = int_to_ptr.vmem [resolvable:$true] %s15
      %21 = dma.hbm_to_vmem [thread:$0]  %s0, 256, %s16, [#allocation3], 128, 128, 8
    $region5: #{tpu_custom_call.1} parent=1 // pred_fallthru
      _
    // Predicated region
    $region6: #{tpu_custom_call.1} parent=1 // pred_check
      _
    $region7: #{tpu_custom_call.1} parent=1 // pred_check_branch
      %23 = sbr.rel (0) target = $region9
    $region8: #{tpu_custom_call.1} parent=1 // pred_region
      %s25 = ssub.s32 2048, 256
      %26 = vsyncadd [#allocation6], %s25
      %s27 = sshll.u32 [#allocation5], 4
      %s28 = int_to_ptr.vmem [resolvable:$true] %s27
      %33 = dma.hbm_to_vmem [thread:$0]  %s1, 256, %s28, [#allocation6], 128, 128, 8
    $region9: #{tpu_custom_call.1} parent=1 // pred_fallthru
      _
    // Predicated region
    $region10: #{tpu_custom_call.1} parent=1 // pred_check
      _
    $region11: #{tpu_custom_call.1} parent=1 // pred_check_branch
      %35 = sbr.rel (0) target = $region13
    $region12: #{tpu_custom_call.1} parent=1 // pred_region
      %36 = dma.done [#allocation3], 2048
    $region13: #{tpu_custom_call.1} parent=1 // pred_fallthru
      _
    // Predicated region
    $region14: #{tpu_custom_call.1} parent=1 // pred_check
      _
    $region15: #{tpu_custom_call.1} parent=1 // pred_check_branch
      %38 = sbr.rel (0) target = $region17
    $region16: #{tpu_custom_call.1} parent=1 // pred_region
      %39 = dma.done [#allocation6], 2048
    $region17: #{tpu_custom_call.1} parent=1 // pred_fallthru
      _
    %v40 = vld [vmem:[#allocation2] sm:$0xff]
    %v41 = vld [vmem:[#allocation2 + $0x8] sm:$0xff]
    %v42 = vld [vmem:[#allocation2 + $0x10] sm:$0xff]
    %v43 = vld [vmem:[#allocation2 + $0x18] sm:$0xff]
    %v44 = vld [vmem:[#allocation2 + $0x20] sm:$0xff]
    %v45 = vld [vmem:[#allocation2 + $0x28] sm:$0xff]
    %v46 = vld [vmem:[#allocation2 + $0x30] sm:$0xff]
    %v47 = vld [vmem:[#allocation2 + $0x38] sm:$0xff]
    %v48 = vld [vmem:[#allocation2 + $0x40] sm:$0xff]
    %v49 = vld [vmem:[#allocation2 + $0x48] sm:$0xff]
    %v50 = vld [vmem:[#allocation2 + $0x50] sm:$0xff]
    %v51 = vld [vmem:[#allocation2 + $0x58] sm:$0xff]
    %v52 = vld [vmem:[#allocation2 + $0x60] sm:$0xff]
    %v53 = vld [vmem:[#allocation2 + $0x68] sm:$0xff]
    %v54 = vld [vmem:[#allocation2 + $0x70] sm:$0xff]
    %v55 = vld [vmem:[#allocation2 + $0x78] sm:$0xff]
    %v56 = vld [vmem:[#allocation5] sm:$0xff]
    %v57 = vld [vmem:[#allocation5 + $0x8] sm:$0xff]
    %v58 = vld [vmem:[#allocation5 + $0x10] sm:$0xff]
    %v59 = vld [vmem:[#allocation5 + $0x18] sm:$0xff]
    %v60 = vld [vmem:[#allocation5 + $0x20] sm:$0xff]
    %v61 = vld [vmem:[#allocation5 + $0x28] sm:$0xff]
    %v62 = vld [vmem:[#allocation5 + $0x30] sm:$0xff]
    %v63 = vld [vmem:[#allocation5 + $0x38] sm:$0xff]
    %v64 = vld [vmem:[#allocation5 + $0x40] sm:$0xff]
    %v65 = vld [vmem:[#allocation5 + $0x48] sm:$0xff]
    %v66 = vld [vmem:[#allocation5 + $0x50] sm:$0xff]
    %v67 = vld [vmem:[#allocation5 + $0x58] sm:$0xff]
    %v68 = vld [vmem:[#allocation5 + $0x60] sm:$0xff]
    %v69 = vld [vmem:[#allocation5 + $0x68] sm:$0xff]
    %v70 = vld [vmem:[#allocation5 + $0x70] sm:$0xff]
    %v71 = vld [vmem:[#allocation5 + $0x78] sm:$0xff]
    %v72 = vsub.f32 %v40, %v56
    %v73 = vsub.f32 %v41, %v57
    %v74 = vsub.f32 %v42, %v58
    %v75 = vsub.f32 %v43, %v59
    %v76 = vsub.f32 %v44, %v60
    %v77 = vsub.f32 %v45, %v61
    %v78 = vsub.f32 %v46, %v62
    %v79 = vsub.f32 %v47, %v63
    %v80 = vsub.f32 %v48, %v64
    %v81 = vsub.f32 %v49, %v65
    %v82 = vsub.f32 %v50, %v66
    %v83 = vsub.f32 %v51, %v67
    %v84 = vsub.f32 %v52, %v68
    %v85 = vsub.f32 %v53, %v69
    %v86 = vsub.f32 %v54, %v70
    %v87 = vsub.f32 %v55, %v71
    %v88 = vmul.f32 %v72, %v72
    %v89 = vmul.f32 %v73, %v73
    %v90 = vmul.f32 %v74, %v74
    %v91 = vmul.f32 %v75, %v75
    %v92 = vmul.f32 %v76, %v76
    %v93 = vmul.f32 %v77, %v77
    %v94 = vmul.f32 %v78, %v78
    %v95 = vmul.f32 %v79, %v79
    %v96 = vmul.f32 %v80, %v80
    %v97 = vmul.f32 %v81, %v81
    %v98 = vmul.f32 %v82, %v82
    %v99 = vmul.f32 %v83, %v83
    %v100 = vmul.f32 %v84, %v84
    %v101 = vmul.f32 %v85, %v85
    %v102 = vmul.f32 %v86, %v86
    %v103 = vmul.f32 %v87, %v87
    %vm104 = vcmask 261120
    %v106 = vsel %vm104, %v88, 0
    %v109 = vsel %vm104, %v89, 0
    %v112 = vsel %vm104, %v90, 0
    %v115 = vsel %vm104, %v91, 0
    %v118 = vsel %vm104, %v92, 0
    %v121 = vsel %vm104, %v93, 0
    %v124 = vsel %vm104, %v94, 0
    %v127 = vsel %vm104, %v95, 0
    %v130 = vsel %vm104, %v96, 0
    %v133 = vsel %vm104, %v97, 0
    %v136 = vsel %vm104, %v98, 0
    %v139 = vsel %vm104, %v99, 0
    %v142 = vsel %vm104, %v100, 0
    %v145 = vsel %vm104, %v101, 0
    %v148 = vsel %vm104, %v102, 0
    %v151 = vsel %vm104, %v103, 0
    %153 = vmatprep.subr.mxu0 0.0
    %154 = vmatpush1.msra.mxu0 0.0
    %155 = vmatprep.subr.mxu0 0.0
    %156 = vmatpush1.msra.mxu0 0.0
    %157 = vmatprep.subr.mxu0 0.0
    %158 = vmatpush1.msra.mxu0 0.0
    %159 = vmatprep.subr.mxu0 0.0
    %160 = vmatpush1.msra.mxu0 0.0
    %161 = vmatprep.subr.mxu0 0.0
    %162 = vmatpush1.msra.mxu0 0.0
    %163 = vmatprep.subr.mxu0 0.0
    %164 = vmatpush1.msra.mxu0 0.0
    %165 = vmatprep.subr.mxu0 0.0
    %166 = vmatpush1.msra.mxu0 0.0
    %167 = vmatprep.subr.mxu0 0.0
    %168 = vmatpush1.msra.mxu0 0.0
    %169 = vmatprep.subr.mxu0 0.0
    %170 = vmatpush1.msra.mxu0 0.0
    %171 = vmatprep.subr.mxu0 0.0
    %172 = vmatpush1.msra.mxu0 0.0
    %173 = vmatprep.subr.mxu0 0.0
    %174 = vmatpush1.msra.mxu0 0.0
    %175 = vmatprep.subr.mxu0 0.0
    %176 = vmatpush1.msra.mxu0 0.0
    %177 = vmatprep.subr.mxu0 0.0
    %178 = vmatpush1.msra.mxu0 1.0
    %179 = vmatprep.subr.mxu0 0.0
    %180 = vmatpush1.msra.mxu0 1.0
    %181 = vmatprep.subr.mxu0 0.0
    %182 = vmatpush1.msra.mxu0 1.0
    %183 = vmatprep.subr.mxu0 0.0
    %184 = vmatpush1.msra.mxu0 1.0
    %185 = vmatprep.subr.mxu0 0.0
    %186 = vmatpush2.msra.mxu0 0.0
    %187 = vmatprep.subr.mxu0 0.0
    %188 = vmatpush2.msra.mxu0 0.0
    %189 = vmatprep.subr.mxu0 0.0
    %190 = vmatpush2.msra.mxu0 0.0
    %191 = vmatprep.subr.mxu0 0.0
    %192 = vmatpush2.msra.mxu0 0.0
    %193 = vmatprep.subr.mxu0 0.0
    %194 = vmatpush2.msra.mxu0 0.0
    %195 = vmatprep.subr.mxu0 0.0
    %196 = vmatpush2.msra.mxu0 0.0
    %197 = vmatprep.subr.mxu0 0.0
    %198 = vmatpush2.msra.mxu0 0.0
    %199 = vmatprep.subr.mxu0 0.0
    %200 = vmatpush2.msra.mxu0 0.0
    %201 = vmatprep.subr.mxu0 0.0
    %202 = vmatpush2.msra.mxu0 0.0
    %203 = vmatprep.subr.mxu0 0.0
    %204 = vmatpush2.msra.mxu0 0.0
    %205 = vmatprep.subr.mxu0 0.0
    %206 = vmatpush2.msra.mxu0 0.0
    %207 = vmatprep.subr.mxu0 0.0
    %208 = vmatpush2.msra.mxu0 0.0
    %209 = vmatprep.subr.mxu0 0.0
    %210 = vmatpush2.msra.mxu0 0.0
    %211 = vmatprep.subr.mxu0 0.0
    %212 = vmatpush2.msra.mxu0 0.0
    %213 = vmatprep.subr.mxu0 0.0
    %214 = vmatpush2.msra.mxu0 0.0
    %215 = vmatprep.subr.mxu0 0.0
    %216 = vmatpush2.msra.mxu0 0.0
    %217 = vmatprep.mubr.f32.mxu0 0.0
    %218 = vmatmul.mubr.f32.gmra.mxu0 %v106
    %v219 = vpop.f32.mrf.mxu0
    %v220 = vadd.f32 0.0, %v219
    %v221 = vpop.f32.mrf.mxu0
    %222 = vmatprep.mubr.f32.mxu0 0.0
    %223 = vmatmul.mubr.f32.gmra.mxu0 %v109
    %v224 = vpop.f32.mrf.mxu0
    %v225 = vadd.f32 0.0, %v224
    %v226 = vpop.f32.mrf.mxu0
    %227 = vmatprep.mubr.f32.mxu0 0.0
    %228 = vmatmul.mubr.f32.gmra.mxu0 %v112
    %v229 = vpop.f32.mrf.mxu0
    %v230 = vadd.f32 0.0, %v229
    %v231 = vpop.f32.mrf.mxu0
    %232 = vmatprep.mubr.f32.mxu0 0.0
    %233 = vmatmul.mubr.f32.gmra.mxu0 %v115
    %v234 = vpop.f32.mrf.mxu0
    %v235 = vadd.f32 0.0, %v234
    %v236 = vpop.f32.mrf.mxu0
    %237 = vmatprep.mubr.f32.mxu0 0.0
    %238 = vmatmul.mubr.f32.gmra.mxu0 %v118
    %v239 = vpop.f32.mrf.mxu0
    %v240 = vadd.f32 0.0, %v239
    %v241 = vpop.f32.mrf.mxu0
    %242 = vmatprep.mubr.f32.mxu0 0.0
    %243 = vmatmul.mubr.f32.gmra.mxu0 %v121
    %v244 = vpop.f32.mrf.mxu0
    %v245 = vadd.f32 0.0, %v244
    %v246 = vpop.f32.mrf.mxu0
    %247 = vmatprep.mubr.f32.mxu0 0.0
    %248 = vmatmul.mubr.f32.gmra.mxu0 %v124
    %v249 = vpop.f32.mrf.mxu0
    %v250 = vadd.f32 0.0, %v249
    %v251 = vpop.f32.mrf.mxu0
    %252 = vmatprep.mubr.f32.mxu0 0.0
    %253 = vmatmul.mubr.f32.gmra.mxu0 %v127
    %v254 = vpop.f32.mrf.mxu0
    %v255 = vadd.f32 0.0, %v254
    %v256 = vpop.f32.mrf.mxu0
    %257 = vmatprep.mubr.f32.mxu0 0.0
    %258 = vmatmul.mubr.f32.gmra.mxu0 %v130
    %v259 = vpop.f32.mrf.mxu0
    %v260 = vadd.f32 0.0, %v259
    %v261 = vpop.f32.mrf.mxu0
    %262 = vmatprep.mubr.f32.mxu0 0.0
    %263 = vmatmul.mubr.f32.gmra.mxu0 %v133
    %v264 = vpop.f32.mrf.mxu0
    %v265 = vadd.f32 0.0, %v264
    %v266 = vpop.f32.mrf.mxu0
    %267 = vmatprep.mubr.f32.mxu0 0.0
    %268 = vmatmul.mubr.f32.gmra.mxu0 %v136
    %v269 = vpop.f32.mrf.mxu0
    %v270 = vadd.f32 0.0, %v269
    %v271 = vpop.f32.mrf.mxu0
    %272 = vmatprep.mubr.f32.mxu0 0.0
    %273 = vmatmul.mubr.f32.gmra.mxu0 %v139
    %v274 = vpop.f32.mrf.mxu0
    %v275 = vadd.f32 0.0, %v274
    %v276 = vpop.f32.mrf.mxu0
    %277 = vmatprep.mubr.f32.mxu0 0.0
    %278 = vmatmul.mubr.f32.gmra.mxu0 %v142
    %v279 = vpop.f32.mrf.mxu0
    %v280 = vadd.f32 0.0, %v279
    %v281 = vpop.f32.mrf.mxu0
    %282 = vmatprep.mubr.f32.mxu0 0.0
    %283 = vmatmul.mubr.f32.gmra.mxu0 %v145
    %v284 = vpop.f32.mrf.mxu0
    %v285 = vadd.f32 0.0, %v284
    %v286 = vpop.f32.mrf.mxu0
    %287 = vmatprep.mubr.f32.mxu0 0.0
    %288 = vmatmul.mubr.f32.gmra.mxu0 %v148
    %v289 = vpop.f32.mrf.mxu0
    %v290 = vadd.f32 0.0, %v289
    %v291 = vpop.f32.mrf.mxu0
    %292 = vmatprep.mubr.f32.mxu0 0.0
    %293 = vmatmul.mubr.f32.gmra.mxu0 %v151
    %v294 = vpop.f32.mrf.mxu0
    %v295 = vadd.f32 0.0, %v294
    %v296 = vpop.f32.mrf.mxu0
    %297 = vdwg.mxu0
    %298 = vxpose.xlu0.b32.start [1/16] %v220, 128
    %299 = vxpose.xlu0.b32.cont [2/16] %v225, 128
    %300 = vxpose.xlu0.b32.cont [3/16] %v230, 128
    %301 = vxpose.xlu0.b32.cont [4/16] %v235, 128
    %302 = vxpose.xlu0.b32.cont [5/16] %v240, 128
    %303 = vxpose.xlu0.b32.cont [6/16] %v245, 128
    %304 = vxpose.xlu0.b32.cont [7/16] %v250, 128
    %305 = vxpose.xlu0.b32.cont [8/16] %v255, 128
    %306 = vxpose.xlu0.b32.cont [9/16] %v260, 128
    %307 = vxpose.xlu0.b32.cont [10/16] %v265, 128
    %308 = vxpose.xlu0.b32.cont [11/16] %v270, 128
    %309 = vxpose.xlu0.b32.cont [12/16] %v275, 128
    %310 = vxpose.xlu0.b32.cont [13/16] %v280, 128
    %311 = vxpose.xlu0.b32.cont [14/16] %v285, 128
    %312 = vxpose.xlu0.b32.cont [15/16] %v290, 128
    %313 = vxpose.xlu0.b32.end [16/16] %v295, 128
    %v314 = vpop.trf.xlu0
    %v315 = vpop.trf.xlu0
    %v316 = vpop.trf.xlu0
    %v317 = vpop.trf.xlu0
    %v318 = vpop.trf.xlu0
    %v319 = vpop.trf.xlu0
    %v320 = vpop.trf.xlu0
    %v321 = vpop.trf.xlu0
    %v322 = vpop.trf.xlu0
    %v323 = vpop.trf.xlu0
    %v324 = vpop.trf.xlu0
    %v325 = vpop.trf.xlu0
    %v326 = vpop.trf.xlu0
    %v327 = vpop.trf.xlu0
    %v328 = vpop.trf.xlu0
    %v329 = vpop.trf.xlu0
    %330 = vst [vmem:[#allocation7] sm:$0x1] %v314
    // Predicated region
    $region18: #{tpu_custom_call.1} parent=1 // pred_check
      _
    $region19: #{tpu_custom_call.1} parent=1 // pred_check_branch
      %332 = sbr.rel (0) target = $region21
    $region20: #{tpu_custom_call.1} parent=1 // pred_region
      %s334 = ssub.s32 16, 16
      %335 = vsyncadd [#allocation4], %s334
      %s337 = sshll.u32 [#allocation7], 4
      %s338 = int_to_ptr.vmem [resolvable:$true] %s337
      %340 = dma.vmem_to_hbm [thread:$0]  %s338, 16, %s2, [#allocation4]
    $region21: #{tpu_custom_call.1} parent=1 // pred_fallthru
      _
    // Predicated region
    $region22: #{tpu_custom_call.1} parent=1 // pred_check
      _
    $region23: #{tpu_custom_call.1} parent=1 // pred_check_branch
      %342 = sbr.rel (0) target = $region25
    $region24: #{tpu_custom_call.1} parent=1 // pred_region
      %343 = dma.done [#allocation4], 16
    $region25: #{tpu_custom_call.1} parent=1 // pred_fallthru
      _
    %344 = vsyncpa [#allocation3], 1
    %345 = vsyncpa [#allocation6], 1
    %346 = vsyncpa [#allocation4], 1

</llo_original>
